<compile_context>
chip_gen: v6e
topology: v6e:2x2x1
jax: 0.10.0
libtpu: 0.0.40
codegen_flags: <defaults>
</compile_context>

<pallas_src>
import jax
import jax.numpy as jnp
from jax.experimental import pallas as pl
from jax.experimental.pallas import tpu as pltpu

_EPS = 1e-12  # matches torch F.normalize default eps


def _round_up(v, m):
    return ((v + m - 1) // m) * m


def _normed_linear_kernel(x_ref, w_ref, inv_wn_ref, o_ref):
    # out[i, j] = (x_i / max(||x_i||, eps)) . (w_j / max(||w_j||, eps))
    xf = x_ref[...].astype(jnp.float32)

    # Per-row reciprocal L2 norm (fp32 math, rsqrt on the EUP slot).
    row_ss = jnp.sum(xf * xf, axis=1, keepdims=True)               # (tn, 1)
    inv_xn = jax.lax.rsqrt(jnp.maximum(row_ss, _EPS * _EPS))       # 1/max(||x_i||,eps)

    # Normalize rows BEFORE the MXU cast (better bf16 conditioning, and the
    # (tn, D_pad) pass is cheaper than a second (tn, K_pad) output pass).
    xn = (xf * inv_xn).astype(w_ref.dtype)

    # Raw matmul on the MXU with fp32 accumulation; weight arrives pre-cast.
    s = jnp.dot(xn, w_ref[...], preferred_element_type=jnp.float32)  # (tn, K_pad)

    # Single cheap output scaling by the hoisted column inverse-norms.
    o_ref[...] = (s * inv_wn_ref[...]).astype(o_ref.dtype)


def normed_linear(x, weight, *, block_n=512, mxu_dtype=jnp.bfloat16,
                  out_dtype=None):
    """F.normalize(x, dim=1) @ F.normalize(weight, dim=0) via Pallas."""
    n, d = x.shape
    d2, k = weight.shape
    assert d == d2, "in_features mismatch"
    out_dtype = x.dtype if out_dtype is None else out_dtype

    # Lane-dense 128-multiples on feature / output axes.
    d_pad = _round_up(d, 128)
    k_pad = _round_up(k, 128)

    # x: pad ONLY the feature axis (zeros required for exact row norms); no
    # batch-padding HBM copy -- the grid handles a ragged last row block.
    xp = x if d_pad == d else jnp.pad(x, ((0, 0), (0, d_pad - d)))

    # Weight: zero-pad + cast to the MXU dtype once here (fused by XLA).
    wp = jnp.pad(weight, ((0, d_pad - d), (0, k_pad - k))).astype(mxu_dtype)

    # Column inverse norms are static per weight: compute once (fp32) here.
    # Padded columns get 0, so padded output columns are exactly 0.
    wf = weight.astype(jnp.float32)
    col_ss = jnp.sum(wf * wf, axis=0, keepdims=True)               # (1, k)
    inv_wn = jax.lax.rsqrt(jnp.maximum(col_ss, _EPS * _EPS))
    inv_wn = jnp.pad(inv_wn, ((0, 0), (0, k_pad - k)))             # (1, k_pad)

    # Row tile: multiple of 8; aim for >= 2 grid steps so the "parallel" batch
    # axis can shard across both v7x TensorCores.
    tn = min(block_n, _round_up(n, 8))
    if pl.cdiv(n, tn) < 2 and n > 8:
        tn = _round_up(pl.cdiv(n, 2), 8)
    grid = (pl.cdiv(n, tn),)

    # Explicit scoped-VMEM budget: double-buffered x/out tiles + resident
    # weight + fp32 intermediates, with headroom; capped below v7x physical.
    x_b = xp.dtype.itemsize
    w_b = jnp.dtype(mxu_dtype).itemsize
    o_b = jnp.dtype(out_dtype).itemsize
    est = (2 * tn * d_pad * x_b          # x tiles (double-buffered)
           + 2 * tn * k_pad * o_b        # out tiles (double-buffered)
           + 2 * d_pad * k_pad * w_b     # resident weight (worst case 2 bufs)
           + 2 * k_pad * 4               # inv_wn
           + 4 * tn * max(d_pad, k_pad) * 4)  # fp32 temporaries headroom
    vmem_limit = int(min(64 * 2**20, max(32 * 2**20, 2 * est)))

    out = pl.pallas_call(
        _normed_linear_kernel,
        out_shape=jax.ShapeDtypeStruct((n, k_pad), out_dtype),
        grid=grid,
        in_specs=[
            pl.BlockSpec((tn, d_pad), lambda i: (i, 0)),     # x: tiled over batch
            pl.BlockSpec((d_pad, k_pad), lambda i: (0, 0)),  # weight: resident (bf16)
            pl.BlockSpec((1, k_pad), lambda i: (0, 0)),      # 1/||w_col||: resident
        ],
        out_specs=pl.BlockSpec((tn, k_pad), lambda i: (i, 0)),
        compiler_params=pltpu.CompilerParams(
            dimension_semantics=("parallel",),  # batch axis shards across TCs
            vmem_limit_bytes=vmem_limit,
        ),
    )(xp, wp, inv_wn)
    return out if k_pad == k else out[:, :k]


def init_weight(key, in_features, out_features):
    # Mirrors: weight.uniform_(-1, 1).renorm_(2, 1, 1e-5).mul_(1e5)
    w = jax.random.uniform(key, (in_features, out_features),
                           minval=-1.0, maxval=1.0, dtype=jnp.float32)
    col_norm = jnp.sqrt(jnp.sum(w * w, axis=0, keepdims=True))
    scale = jnp.where(col_norm > 1e-5, 1e-5 / col_norm, 1.0)
    return w * scale * 1e5


def normed_linear_ref(x, weight):
    xn = x / jnp.maximum(jnp.linalg.norm(x, axis=1, keepdims=True), _EPS)
    wn = weight / jnp.maximum(jnp.linalg.norm(weight, axis=0, keepdims=True), _EPS)
    return xn @ wn


if __name__ == "__main__":
    key = jax.random.PRNGKey(0)
    kx, kw, kx2, kw2 = jax.random.split(key, 4)

    # Small WRN-classifier-head-like shapes.
    batch, in_features, out_features = 8, 32, 16
    x = jax.random.normal(kx, (batch, in_features), dtype=jnp.float32)
    weight = init_weight(kw, in_features, out_features)
    ref = normed_linear_ref(x, weight)

    # Default path: bf16 MXU operands (fp32 accumulate + fp32 norm math).
    out_bf16 = jax.block_until_ready(normed_linear(x, weight))
    assert out_bf16.shape == (batch, out_features)
    assert jnp.allclose(out_bf16, ref, atol=1e-2, rtol=1e-2), \
        "mismatch vs reference (small, bf16 MXU)"

    # fp32 MXU path: verifies the structure exactly.
    out_f32 = jax.block_until_ready(normed_linear(x, weight, mxu_dtype=jnp.float32))
    assert jnp.allclose(out_f32, ref, atol=2e-5, rtol=2e-5), \
        "mismatch vs reference (small, fp32 MXU)"

    # Larger case exercising multiple grid steps, ragged last row block and
    # feature/output padding.
    batch2, in2, out2 = 300, 160, 10
    x2 = jax.random.normal(kx2, (batch2, in2), dtype=jnp.float32)
    w2 = init_weight(kw2, in2, out2)
    ref_big = normed_linear_ref(x2, w2)

    out_big = jax.block_until_ready(normed_linear(x2, w2, block_n=128))
    assert out_big.shape == (batch2, out2)
    assert jnp.allclose(out_big, ref_big, atol=1e-2, rtol=1e-2), \
        "mismatch vs reference (big, bf16 MXU)"

    out_big_f32 = jax.block_until_ready(
        normed_linear(x2, w2, block_n=128, mxu_dtype=jnp.float32))
    assert jnp.allclose(out_big_f32, ref_big, atol=2e-5, rtol=2e-5), \
        "mismatch vs reference (big, fp32 MXU)"

    print("KERNEL_OK")
</pallas_src>

<mosaic_0001>
module attributes {stable_mosaic.version = 11 : i64} {
  func.func @_normed_linear_kernel(%arg0: i32, %arg1: memref<8x128xf32, #tpu.memory_space<vmem>>, %arg2: memref<128x128xbf16, #tpu.memory_space<vmem>>, %arg3: memref<1x128xf32, #tpu.memory_space<vmem>>, %arg4: memref<8x128xf32, #tpu.memory_space<vmem>>) attributes {dimension_semantics = [#tpu.dimension_semantics<parallel>], iteration_bounds = array<i64: 1>, scalar_prefetch = 0 : i64, scratch_operands = 0 : i64, tpu.core_type = #tpu.core_type<tc>, window_params = [{transform_indices = @transform_0, window_bounds = array<i64: 8, 128>}, {pipeline_mode = #tpu.pipeline_mode<synchronous>, transform_indices = @transform_1, window_bounds = array<i64: 128, 128>}, {pipeline_mode = #tpu.pipeline_mode<synchronous>, transform_indices = @transform_2, window_bounds = array<i64: 1, 128>}, {transform_indices = @transform_3, window_bounds = array<i64: 8, 128>}]} {
    %c0 = arith.constant 0 : index
    %c0_0 = arith.constant 0 : index
    %0 = vector.load %arg1[%c0, %c0_0] : memref<8x128xf32, #tpu.memory_space<vmem>>, vector<8x128xf32>
    %1 = arith.mulf %0, %0 : vector<8x128xf32>
    %cst = arith.constant dense<0.000000e+00> : vector<8xf32>
    %2 = vector.multi_reduction <add>, %1, %cst [1] : vector<8x128xf32> to vector<8xf32>
    %3 = vector.shape_cast %2 : vector<8xf32> to vector<8x1xf32>
    %cst_1 = arith.constant 1.000000e-24 : f32
    %4 = vector.broadcast %cst_1 : f32 to vector<8x1xf32>
    %5 = arith.maximumf %3, %4 : vector<8x1xf32>
    %6 = math.rsqrt %5 : vector<8x1xf32>
    %7 = vector.broadcast %6 : vector<8x1xf32> to vector<8x128xf32>
    %8 = arith.mulf %0, %7 : vector<8x128xf32>
    %9 = arith.truncf %8 : vector<8x128xf32> to vector<8x128xbf16>
    %c0_2 = arith.constant 0 : index
    %c0_3 = arith.constant 0 : index
    %10 = vector.load %arg2[%c0_2, %c0_3] : memref<128x128xbf16, #tpu.memory_space<vmem>>, vector<128x128xbf16>
    %cst_4 = arith.constant dense<0.000000e+00> : vector<8x128xf32>
    %11 = tpu.matmul %9, %10, %cst_4 {dimension_numbers = #tpu.dot_dimension_numbers<[1], [0], [0], [1], [0, 0, 1, 1], [], []>} : vector<8x128xbf16>, vector<128x128xbf16>, vector<8x128xf32> -> vector<8x128xf32>
    %c0_5 = arith.constant 0 : index
    %c0_6 = arith.constant 0 : index
    %12 = vector.load %arg3[%c0_5, %c0_6] : memref<1x128xf32, #tpu.memory_space<vmem>>, vector<1x128xf32>
    %13 = vector.broadcast %12 : vector<1x128xf32> to vector<8x128xf32>
    %14 = arith.mulf %11, %13 : vector<8x128xf32>
    %c0_7 = arith.constant 0 : index
    %c0_8 = arith.constant 0 : index
    %15 = vector.load %arg4[%c0_7, %c0_8] : memref<8x128xf32, #tpu.memory_space<vmem>>, vector<8x128xf32>
    tpu.vector_store %arg4[%c0_7, %c0_8], %14 {strides = array<i32>} : memref<8x128xf32, #tpu.memory_space<vmem>>, vector<8x128xf32>,
    return
  }
  func.func @transform_0(%arg0: i32) -> (i32, i32) {
    %c0_i32 = arith.constant 0 : i32
    %c0_i32_0 = arith.constant 0 : i32
    return %arg0, %c0_i32 : i32, i32
  }
  func.func @transform_1(%arg0: i32) -> (i32, i32) {
    %c0_i32 = arith.constant 0 : i32
    %c0_i32_0 = arith.constant 0 : i32
    %c0_i32_1 = arith.constant 0 : i32
    return %c0_i32, %c0_i32_0 : i32, i32
  }
  func.func @transform_2(%arg0: i32) -> (i32, i32) {
    %c0_i32 = arith.constant 0 : i32
    %c0_i32_0 = arith.constant 0 : i32
    %c0_i32_1 = arith.constant 0 : i32
    return %c0_i32, %c0_i32_0 : i32, i32
  }
  func.func @transform_3(%arg0: i32) -> (i32, i32) {
    %c0_i32 = arith.constant 0 : i32
    %c0_i32_0 = arith.constant 0 : i32
    return %arg0, %c0_i32 : i32, i32
  }
}

</mosaic_0001>

<llo_original>
// kernel: tpu_custom_call.1
$region0: #{tpu_custom_call.1}
  #allocation0 [shape = 'u32[]', space=smem, size = 0x4, offset = 0x4, fixed_abs, tag = 'smem constant byte address 0x4 - core index']
  #allocation1 [shape = 'u32[144,128]{1,0:T(1,128)}', space=vmem, size = 0x12000, scoped, tag = 'internal scratch']
  %s0 = inlined_call_operand.hbm [shape: f32[8,128], index: 0, kind: input, shape index: {}]
  %s1 = inlined_call_operand.hbm [shape: bf16[128,128], index: 1, kind: input, shape index: {}]
  %s2 = inlined_call_operand.vmem [shape: f32[1,128], index: 2, kind: input, shape index: {}]
  %s3 = inlined_call_operand.hbm [shape: f32[8,128], index: 3, kind: output, shape index: {}]
  %s4 = sld [smem:[#allocation0]]
  $region30: #{tpu_custom_call.1} parent=0
    _
  %s6 = ssub.s32 1, %s4
  %s7 = scalar_select 0, %s6, %s4
  $region1: #{tpu_custom_call.1} parent=0
    #allocation2 [shape = 'u8[4096]{0}', space=vmem, size = 0x1000, scoped, tag = 'input window, operand 0, single buffered']
    #allocation3 [shape = 's32[1]{0}', space=sflag, size = 0x4, scoped, tag = 'scoped memory for tpu_custom_call.1']
    #allocation4 [shape = 's32[1]{0}', space=sflag, size = 0x4, scoped, tag = 'scoped memory for tpu_custom_call.1']
    #allocation5 [shape = 'u8[32768]{0}', space=vmem, size = 0x8000, scoped, tag = 'input window, operand 1, single buffered']
    #allocation6 [shape = 's32[1]{0}', space=sflag, size = 0x4, scoped, tag = 'scoped memory for tpu_custom_call.1']
    #allocation7 [shape = 'u8[4096]{0}', space=vmem, size = 0x1000, scoped, tag = 'output window, operand 0, single buffered']
    %8 = vsyncpa [#allocation3], 0
    %9 = vsyncpa [#allocation6], 0
    %10 = vsyncpa [#allocation4], 0
    // Predicated region
    $region2: #{tpu_custom_call.1} parent=1 // pred_check
      _
    $region3: #{tpu_custom_call.1} parent=1 // pred_check_branch
      %12 = sbr.rel (0) target = $region5
    $region4: #{tpu_custom_call.1} parent=1 // pred_region
      %s14 = ssub.s32 128, 128
      %15 = vsyncadd [#allocation3], %s14
      %s17 = sshll.u32 [#allocation2], 4
      %s18 = int_to_ptr.vmem [resolvable:$true] %s17
      %20 = dma.hbm_to_vmem [thread:$0]  %s0, 128, %s18, [#allocation3]
    $region5: #{tpu_custom_call.1} parent=1 // pred_fallthru
      _
    // Predicated region
    $region6: #{tpu_custom_call.1} parent=1 // pred_check
      _
    $region7: #{tpu_custom_call.1} parent=1 // pred_check_branch
      %22 = sbr.rel (0) target = $region9
    $region8: #{tpu_custom_call.1} parent=1 // pred_region
      %s24 = ssub.s32 1024, 1024
      %25 = vsyncadd [#allocation6], %s24
      %s26 = sshll.u32 [#allocation5], 4
      %s27 = int_to_ptr.vmem [resolvable:$true] %s26
      %32 = dma.hbm_to_vmem [thread:$0]  %s1, 1024, %s27, [#allocation6], 64, 64, 4
    $region9: #{tpu_custom_call.1} parent=1 // pred_fallthru
      _
    // Predicated region
    $region10: #{tpu_custom_call.1} parent=1 // pred_check
      _
    $region11: #{tpu_custom_call.1} parent=1 // pred_check_branch
      %34 = sbr.rel (0) target = $region13
    $region12: #{tpu_custom_call.1} parent=1 // pred_region
      _
    $region13: #{tpu_custom_call.1} parent=1 // pred_fallthru
      _
    // Predicated region
    $region14: #{tpu_custom_call.1} parent=1 // pred_check
      _
    $region15: #{tpu_custom_call.1} parent=1 // pred_check_branch
      %36 = sbr.rel (0) target = $region17
    $region16: #{tpu_custom_call.1} parent=1 // pred_region
      %37 = dma.done [#allocation3], 128
    $region17: #{tpu_custom_call.1} parent=1 // pred_fallthru
      _
    // Predicated region
    $region18: #{tpu_custom_call.1} parent=1 // pred_check
      _
    $region19: #{tpu_custom_call.1} parent=1 // pred_check_branch
      %39 = sbr.rel (0) target = $region21
    $region20: #{tpu_custom_call.1} parent=1 // pred_region
      %40 = dma.done [#allocation6], 1024
    $region21: #{tpu_custom_call.1} parent=1 // pred_fallthru
      _
    %v42 = vld [vmem:[#allocation2] sm:$0xff]
    %v43 = vmul.f32 %v42, %v42
    %44 = vadd.xlane.f32.xlu0 %v43
    %v45 = vpop.xlane.xlu0 %44
    %v46 = vmax.f32 %v45, 1e-24
    %v47 = vrsqrt.pop %v46
    %v48 = vmul.f32 %v42, %v47
    %v49 = vpack.c.bf16 %v48, %v48
    %v50 = vld [vmem:[#allocation5] sm:$0xf]
    %v51 = vld [vmem:[#allocation5 + $0x4] sm:$0xf]
    %v52 = vld [vmem:[#allocation5 + $0x8] sm:$0xf]
    %v53 = vld [vmem:[#allocation5 + $0xc] sm:$0xf]
    %v54 = vld [vmem:[#allocation5 + $0x10] sm:$0xf]
    %v55 = vld [vmem:[#allocation5 + $0x14] sm:$0xf]
    %v56 = vld [vmem:[#allocation5 + $0x18] sm:$0xf]
    %v57 = vld [vmem:[#allocation5 + $0x1c] sm:$0xf]
    %v58 = vld [vmem:[#allocation5 + $0x20] sm:$0xf]
    %v59 = vld [vmem:[#allocation5 + $0x24] sm:$0xf]
    %v60 = vld [vmem:[#allocation5 + $0x28] sm:$0xf]
    %v61 = vld [vmem:[#allocation5 + $0x2c] sm:$0xf]
    %v62 = vld [vmem:[#allocation5 + $0x30] sm:$0xf]
    %v63 = vld [vmem:[#allocation5 + $0x34] sm:$0xf]
    %v64 = vld [vmem:[#allocation5 + $0x38] sm:$0xf]
    %v65 = vld [vmem:[#allocation5 + $0x3c] sm:$0xf]
    %v82 = vunpack.c.l.b16 %v50
    %v83 = vunpack.c.l.b16 %v51
    %v84 = vunpack.c.l.b16 %v52
    %v85 = vunpack.c.l.b16 %v53
    %v86 = vunpack.c.l.b16 %v54
    %v87 = vunpack.c.l.b16 %v55
    %v88 = vunpack.c.l.b16 %v56
    %v89 = vunpack.c.l.b16 %v57
    %v90 = vunpack.c.l.b16 %v58
    %v91 = vunpack.c.l.b16 %v59
    %v92 = vunpack.c.l.b16 %v60
    %v93 = vunpack.c.l.b16 %v61
    %v94 = vunpack.c.l.b16 %v62
    %v95 = vunpack.c.l.b16 %v63
    %v96 = vunpack.c.l.b16 %v64
    %v97 = vunpack.c.l.b16 %v65
    %v98 = vpack.c.b16 %v83, %v82
    %v99 = vpack.c.b16 %v85, %v84
    %v100 = vpack.c.b16 %v87, %v86
    %v101 = vpack.c.b16 %v89, %v88
    %v102 = vpack.c.b16 %v91, %v90
    %v103 = vpack.c.b16 %v93, %v92
    %v104 = vpack.c.b16 %v95, %v94
    %v105 = vpack.c.b16 %v97, %v96
    %114 = vmatprep.subr.bf16.mxu0 0
    %115 = vmatpush1.bf16.msra.mxu0 %v105
    %116 = vmatprep.subr.bf16.mxu0 0
    %117 = vmatpush1.bf16.msra.mxu0 %v104
    %118 = vmatprep.subr.bf16.mxu0 0
    %119 = vmatpush1.bf16.msra.mxu0 %v103
    %120 = vmatprep.subr.bf16.mxu0 0
    %121 = vmatpush1.bf16.msra.mxu0 %v102
    %122 = vmatprep.subr.bf16.mxu0 0
    %123 = vmatpush1.bf16.msra.mxu0 %v101
    %124 = vmatprep.subr.bf16.mxu0 0
    %125 = vmatpush1.bf16.msra.mxu0 %v100
    %126 = vmatprep.subr.bf16.mxu0 0
    %127 = vmatpush1.bf16.msra.mxu0 %v99
    %128 = vmatprep.subr.bf16.mxu0 0
    %129 = vmatpush1.bf16.msra.mxu0 %v98
    %130 = vmatprep.subr.bf16.mxu0 0
    %131 = vmatpush2.bf16.msra.mxu0 0
    %132 = vmatprep.subr.bf16.mxu0 0
    %133 = vmatpush2.bf16.msra.mxu0 0
    %134 = vmatprep.subr.bf16.mxu0 0
    %135 = vmatpush2.bf16.msra.mxu0 0
    %136 = vmatprep.subr.bf16.mxu0 0
    %137 = vmatpush2.bf16.msra.mxu0 0
    %138 = vmatprep.subr.bf16.mxu0 0
    %139 = vmatpush2.bf16.msra.mxu0 0
    %140 = vmatprep.subr.bf16.mxu0 0
    %141 = vmatpush2.bf16.msra.mxu0 0
    %142 = vmatprep.subr.bf16.mxu0 0
    %143 = vmatpush2.bf16.msra.mxu0 0
    %144 = vmatprep.subr.bf16.mxu0 0
    %145 = vmatpush2.bf16.msra.mxu0 0
    %146 = vmatprep.mubr.bf16.mxu0 0
    %147 = vmatmul.mubr.bf16.gmra.mxu0 %v49
    %v148 = vpop.f32.mrf.mxu0
    %v149 = vadd.f32 0.0, %v148
    %v150 = vpop.f32.mrf.mxu0
    %v151 = vpop.f32.mrf.mxu0
    %v152 = vpop.f32.mrf.mxu0
    %153 = vdwg.mxu0
    %v154 = vld [vmem:[%s2] sm:$0x1]
    %v156 = vlaneseq
    %v157 = vshrl.u32 %v156, 7
    %v158 = vsub.s32 0, %v157
    %v159 = vrot.slane %v154, %v158
    %v161 = vmul.f32 %v149, %v159
    %162 = vst [vmem:[#allocation7] sm:$0xff] %v161
    // Predicated region
    $region22: #{tpu_custom_call.1} parent=1 // pred_check
      _
    $region23: #{tpu_custom_call.1} parent=1 // pred_check_branch
      %164 = sbr.rel (0) target = $region25
    $region24: #{tpu_custom_call.1} parent=1 // pred_region
      %s166 = ssub.s32 128, 128
      %167 = vsyncadd [#allocation4], %s166
      %s169 = sshll.u32 [#allocation7], 4
      %s170 = int_to_ptr.vmem [resolvable:$true] %s169
      %172 = dma.vmem_to_hbm [thread:$0]  %s170, 128, %s3, [#allocation4]
    $region25: #{tpu_custom_call.1} parent=1 // pred_fallthru
      _
    // Predicated region
    $region26: #{tpu_custom_call.1} parent=1 // pred_check
      _
    $region27: #{tpu_custom_call.1} parent=1 // pred_check_branch
      %174 = sbr.rel (0) target = $region29
    $region28: #{tpu_custom_call.1} parent=1 // pred_region
      %175 = dma.done [#allocation4], 128
    $region29: #{tpu_custom_call.1} parent=1 // pred_fallthru
      _
    %176 = vsyncpa [#allocation3], 1
    %177 = vsyncpa [#allocation6], 1
    %178 = vsyncpa [#allocation4], 1

</llo_original>
